<compile_context>
chip_gen: v5e
topology: v5e:2x2
jax: 0.10.0
libtpu: 0.0.40
codegen_flags: <defaults>
</compile_context>

<pallas_src>
import functools

import jax
import jax.numpy as jnp
from jax.experimental import pallas as pl
from jax.experimental.pallas import tpu as pltpu

_MAX_TB = 256                          # batch-tile cap (sublane dim)
_MAX_TN = 2048                         # feature-tile cap (lane dim)
_VMEM_CAP = 40 * 1024 * 1024           # stay under v7x's 64 MiB physical VMEM
_BOUND_RESIDENT_MAX = 2 * 1024 * 1024  # per bound array, bytes


def _cdiv(a, b):
    return (a + b - 1) // b


def _batch_tile(B):
    # Full dim when small (legal for any dtype sublane packing, no padding),
    # otherwise a 256-row tile (multiple of 8/16/32 so f32/bf16/int8 work).
    return B if B <= _MAX_TB else _MAX_TB


# ----------------------------- reduction='none' -----------------------------

def _elementwise_layout(B, N):
    tb = _batch_tile(B)
    tn = N if N <= _MAX_TN else _MAX_TN
    return tb, tn, _cdiv(B, tb), _cdiv(N, tn)


def _make_elementwise_kernel(clamp, tn, nb, bounds_resident):
    """Streaming elementwise residual (+clamp); partial edge blocks are fine
    because garbage lanes are never written back (bounded output DMA)."""

    def kernel(x_ref, xmin_ref, xmax_ref, lo_ref, hi_ref):
        if nb == 1 or not bounds_resident:
            xmin = xmin_ref[...]
            xmax = xmax_ref[...]
        else:
            c0 = pl.multiple_of(pl.program_id(1) * tn, 128)
            xmin = xmin_ref[:, pl.ds(c0, tn)]
            xmax = xmax_ref[:, pl.ds(c0, tn)]
        x = x_ref[...]
        glo = xmin - x              # (1, tn) broadcasts over batch sublanes
        ghi = x - xmax
        if clamp:
            zero = jnp.zeros((), dtype=glo.dtype)
            glo = jnp.maximum(glo, zero)
            ghi = jnp.maximum(ghi, zero)
        lo_ref[...] = glo
        hi_ref[...] = ghi

    return kernel


# -------------------------- reduction in {sum,mean,max} ---------------------

def _reduce_layout(B, N):
    tb = _batch_tile(B)
    b_blocks = _cdiv(B, tb)
    n128 = N // 128                      # full 128-lane groups in N
    # Split the feature axis across a leading parallel grid axis only when the
    # batch axis provides no parallelism (v7x megacore); costs ~nothing on
    # single-TensorCore chips.
    split = (b_blocks == 1) and (n128 >= 2)
    if N < 128:
        tn, pw = N, N                    # one (possibly unaligned) full block
    elif split:
        tn = 128 * min(_MAX_TN // 128, _cdiv(n128, 2))
        pw = 128
    else:
        tn = 128 * min(_MAX_TN // 128, n128)
        pw = 128
    nb = _cdiv(N, tn)
    if split:
        n_splits, half0 = 2, nb // 2
        per_split = nb - half0           # >= half0, so block idx stays in-bounds
    else:
        n_splits, half0, per_split = 1, 0, nb
    return tb, b_blocks, tn, pw, nb, n_splits, half0, per_split


def _make_reduce_kernel(clamp, use_max, N, tn, pw, nb, half0, per_split,
                        n_splits, bounds_resident):
    needs_col_mask = (N % tn) != 0
    needs_block_mask = (n_splits == 2) and (half0 != per_split)
    n_chunks = tn // pw                  # exact: tn % pw == 0 by construction
    fill = -jnp.inf if use_max else 0.0

    def kernel(x_ref, xmin_ref, xmax_ref, lo_ref, hi_ref, lo_acc, hi_acc):
        s = pl.program_id(0)             # feature split (parallel)
        j = pl.program_id(2)             # feature block within split (arbitrary)

        @pl.when(j == 0)
        def _():
            lo_acc[...] = jnp.full_like(lo_acc, fill)
            hi_acc[...] = jnp.full_like(hi_acc, fill)

        blk = s * half0 + j
        if nb == 1 or not bounds_resident:
            xmin = xmin_ref[...]
            xmax = xmax_ref[...]
        else:
            c0 = pl.multiple_of(blk * tn, 128)
            xmin = xmin_ref[:, pl.ds(c0, tn)]
            xmax = xmax_ref[:, pl.ds(c0, tn)]

        x = x_ref[...].astype(jnp.float32)
        glo = xmin.astype(jnp.float32) - x
        ghi = x - xmax.astype(jnp.float32)
        if clamp:
            glo = jnp.maximum(glo, 0.0)
            ghi = jnp.maximum(ghi, 0.0)

        if needs_col_mask or needs_block_mask:
            valid = None
            if needs_col_mask:
                col = jax.lax.broadcasted_iota(jnp.int32, glo.shape, 1) + blk * tn
                valid = col < N
            if needs_block_mask:
                limit = jnp.where(s == 0, half0, per_split)
                ok = j < limit
                valid = ok if valid is None else jnp.logical_and(valid, ok)
            glo = jnp.where(valid, glo, fill)
            ghi = jnp.where(valid, ghi, fill)

        # Lane-partial accumulation: fold the tile into a (tb, pw) partial with
        # static pw-wide slices (VPU only), then combine with the accumulator.
        def lane_fold(v):
            p = v[:, :pw]
            for k in range(1, n_chunks):
                c = v[:, k * pw:(k + 1) * pw]
                p = jnp.maximum(p, c) if use_max else p + c
            return p

        plo, phi = lane_fold(glo), lane_fold(ghi)
        if use_max:
            lo_acc[...] = jnp.maximum(lo_acc[...], plo)
            hi_acc[...] = jnp.maximum(hi_acc[...], phi)
        else:
            lo_acc[...] = lo_acc[...] + plo
            hi_acc[...] = hi_acc[...] + phi

        @pl.when(j == pl.num_programs(2) - 1)
        def _():
            lo_ref[...] = lo_acc[...]    # lane-dense (tb, pw) f32 store
            hi_ref[...] = hi_acc[...]

    return kernel


# --------------------------------- wrapper ----------------------------------

@functools.partial(jax.jit, static_argnames=("reduction", "clamp"))
def _violation_pallas(x, xmin, xmax, reduction="mean", clamp=True):
    B, N = x.shape
    dt = x.dtype
    itemsize = jnp.dtype(dt).itemsize
    xmin2 = xmin.reshape(1, N).astype(dt)
    xmax2 = xmax.reshape(1, N).astype(dt)

    if reduction in (None, "none"):
        tb, tn, b_blocks, nb = _elementwise_layout(B, N)
        nbp = nb * tn
        resident = nbp * itemsize <= _BOUND_RESIDENT_MAX
        if resident and nbp != N:    # tiny pad of the (1,N) bound rows only
            xmin2 = jnp.pad(xmin2, ((0, 0), (0, nbp - N)))
            xmax2 = jnp.pad(xmax2, ((0, 0), (0, nbp - N)))
        x_spec = pl.BlockSpec((tb, tn), lambda i, j: (i, j))
        if resident:
            bound_spec = pl.BlockSpec((1, nbp), lambda i, j: (0, 0))
            bound_vmem = 2 * 2 * nbp * itemsize
        else:
            bound_spec = pl.BlockSpec((1, tn), lambda i, j: (0, j))
            bound_vmem = 2 * 2 * tn * itemsize
        kernel = _make_elementwise_kernel(clamp, tn, nb, resident)
        out_shape = (jax.ShapeDtypeStruct((B, N), dt),
                     jax.ShapeDtypeStruct((B, N), dt))
        out_specs = [x_spec, x_spec]
        scratch = []
        grid = (b_blocks, nb)
        semantics = ("parallel", "parallel")
        working = 2 * 3 * tb * tn * itemsize + bound_vmem
        bytes_accessed = 3 * B * N * itemsize + 2 * N * itemsize
    else:
        use_max = reduction == "max"
        (tb, b_blocks, tn, pw, nb,
         n_splits, half0, per_split) = _reduce_layout(B, N)
        nbp = nb * tn
        resident = nbp * itemsize <= _BOUND_RESIDENT_MAX
        if resident and nbp != N:
            xmin2 = jnp.pad(xmin2, ((0, 0), (0, nbp - N)))
            xmax2 = jnp.pad(xmax2, ((0, 0), (0, nbp - N)))
        x_spec = pl.BlockSpec((tb, tn), lambda s, i, j: (i, s * half0 + j))
        if resident:
            bound_spec = pl.BlockSpec((1, nbp), lambda s, i, j: (0, 0))
            bound_vmem = 2 * 2 * nbp * itemsize
        else:
            bound_spec = pl.BlockSpec((1, tn), lambda s, i, j: (0, s * half0 + j))
            bound_vmem = 2 * 2 * tn * itemsize
        out_spec = pl.BlockSpec((tb, pw), lambda s, i, j: (i, s))
        out_shape = (jax.ShapeDtypeStruct((B, n_splits * pw), jnp.float32),
                     jax.ShapeDtypeStruct((B, n_splits * pw), jnp.float32))
        out_specs = [out_spec, out_spec]
        kernel = _make_reduce_kernel(clamp, use_max, N, tn, pw, nb, half0,
                                     per_split, n_splits, resident)
        scratch = [pltpu.VMEM((tb, pw), jnp.float32),
                   pltpu.VMEM((tb, pw), jnp.float32)]
        grid = (n_splits, b_blocks, per_split)
        semantics = ("parallel", "parallel", "arbitrary")
        working = (2 * tb * tn * itemsize + bound_vmem + 6 * tb * pw * 4)
        bytes_accessed = (B * N * itemsize + 2 * N * itemsize
                          + 2 * B * n_splits * pw * 4)

    vmem_limit = int(min(_VMEM_CAP, max(16 * 1024 * 1024, 2 * working)))

    outs = pl.pallas_call(
        kernel,
        out_shape=out_shape,
        grid_spec=pltpu.PrefetchScalarGridSpec(
            num_scalar_prefetch=0,
            grid=grid,
            in_specs=[x_spec, bound_spec, bound_spec],
            out_specs=out_specs,
            scratch_shapes=scratch,
        ),
        compiler_params=pltpu.CompilerParams(
            dimension_semantics=semantics,
            vmem_limit_bytes=vmem_limit,
        ),
        cost_estimate=pl.CostEstimate(
            flops=6 * B * N,
            transcendentals=0,
            bytes_accessed=int(bytes_accessed),
        ),
    )(x, xmin2, xmax2)

    if reduction in (None, "none"):
        return outs

    # Tiny trailing fusion: combine lane partials (and split partials) in f32,
    # scale by 1/N for 'mean', then cast back to the input dtype.
    plo, phi = outs
    if reduction == "max":
        glo, ghi = plo.max(axis=1), phi.max(axis=1)
    else:
        glo, ghi = plo.sum(axis=1), phi.sum(axis=1)
        if reduction == "mean":
            inv = jnp.float32(1.0 / N)
            glo, ghi = glo * inv, ghi * inv
    return glo.astype(dt), ghi.astype(dt)


def calc_violations(x, xmin, xmax, reduction="mean", clamp=True):
    """Pallas analogue of OPFViolation._clamped_bound_residual + _reduce_violations."""
    if reduction not in ("none", "mean", "sum", "max", None):
        raise ValueError(f"Invalid reduction={reduction!r}")
    if not jnp.issubdtype(x.dtype, jnp.floating):
        raise ValueError("calc_violations expects floating-point inputs")
    glo, ghi = _violation_pallas(x, xmin, xmax, reduction=reduction, clamp=clamp)
    return {"g_lower": glo, "g_upper": ghi}


def _reference(x, xmin, xmax, reduction, clamp):
    g_lower = xmin[None, :] - x
    g_upper = x - xmax[None, :]
    if clamp:
        g_lower = jnp.maximum(g_lower, 0.0)
        g_upper = jnp.maximum(g_upper, 0.0)
    if reduction in (None, "none"):
        return {"g_lower": g_lower, "g_upper": g_upper}
    red = {"mean": lambda v: v.mean(axis=1),
           "sum": lambda v: v.sum(axis=1),
           "max": lambda v: v.max(axis=1)}[reduction]
    return {"g_lower": red(g_lower), "g_upper": red(g_upper)}


if __name__ == "__main__":
    # Synthetic "network" sizes.  (6, 200): unaligned N, non-split reduce with
    # tail masking.  (5, 384): exercises the feature-split (parallel) reduce
    # path and partial edge blocks.
    key = jax.random.PRNGKey(0)
    ok = True
    for (B, N) in ((6, 200), (5, 384)):
        kx, klo, kw, key = jax.random.split(key, 4)
        x = jax.random.normal(kx, (B, N), dtype=jnp.float32)
        xmin = jax.random.normal(klo, (N,), dtype=jnp.float32) - 0.5
        xmax = xmin + jnp.abs(jax.random.normal(kw, (N,), dtype=jnp.float32)) + 0.1

        for reduction in ("none", "mean", "sum", "max"):
            for clamp in (True, False):
                out = calc_violations(x, xmin, xmax, reduction=reduction, clamp=clamp)
                jax.block_until_ready(out)
                ref = _reference(x, xmin, xmax, reduction, clamp)
                for k in ("g_lower", "g_upper"):
                    if out[k].shape != ref[k].shape or not bool(
                            jnp.allclose(out[k], ref[k], atol=1e-5, rtol=1e-5)):
                        ok = False

    # TODO(synk): objective() / calc_violations() bodies are abstract in the
    # PyTorch module (formulation-specific incidence math); only the shared
    # bound-residual + clamp + reduction hot path is implemented here.

    if ok:
        print("KERNEL_OK")
    else:
        raise SystemExit("mismatch vs reference")
</pallas_src>

<mosaic_0001>
module attributes {stable_mosaic.version = 11 : i64} {
  func.func @kernel(%arg0: i32, %arg1: i32, %arg2: memref<6x200xf32, #tpu.memory_space<vmem>>, %arg3: memref<1x200xf32, #tpu.memory_space<vmem>>, %arg4: memref<1x200xf32, #tpu.memory_space<vmem>>, %arg5: memref<6x200xf32, #tpu.memory_space<vmem>>, %arg6: memref<6x200xf32, #tpu.memory_space<vmem>>) attributes {dimension_semantics = [#tpu.dimension_semantics<parallel>, #tpu.dimension_semantics<parallel>], iteration_bounds = array<i64: 1, 1>, scalar_prefetch = 0 : i64, scratch_operands = 0 : i64, tpu.core_type = #tpu.core_type<tc>, window_params = [{transform_indices = @transform_0, window_bounds = array<i64: 6, 200>}, {pipeline_mode = #tpu.pipeline_mode<synchronous>, transform_indices = @transform_1, window_bounds = array<i64: 1, 200>}, {pipeline_mode = #tpu.pipeline_mode<synchronous>, transform_indices = @transform_2, window_bounds = array<i64: 1, 200>}, {transform_indices = @transform_3, window_bounds = array<i64: 6, 200>}, {transform_indices = @transform_4, window_bounds = array<i64: 6, 200>}]} {
    %c0 = arith.constant 0 : index
    %c0_0 = arith.constant 0 : index
    %0 = vector.load %arg3[%c0, %c0_0] : memref<1x200xf32, #tpu.memory_space<vmem>>, vector<1x200xf32>
    %c0_1 = arith.constant 0 : index
    %c0_2 = arith.constant 0 : index
    %1 = vector.load %arg4[%c0_1, %c0_2] : memref<1x200xf32, #tpu.memory_space<vmem>>, vector<1x200xf32>
    %c0_3 = arith.constant 0 : index
    %c0_4 = arith.constant 0 : index
    %2 = vector.load %arg2[%c0_3, %c0_4] : memref<6x200xf32, #tpu.memory_space<vmem>>, vector<6x200xf32>
    %3 = vector.broadcast %0 : vector<1x200xf32> to vector<6x200xf32>
    %4 = arith.subf %3, %2 : vector<6x200xf32>
    %5 = vector.broadcast %1 : vector<1x200xf32> to vector<6x200xf32>
    %6 = arith.subf %2, %5 : vector<6x200xf32>
    %cst = arith.constant 0.000000e+00 : f32
    %7 = vector.broadcast %cst : f32 to vector<6x200xf32>
    %8 = arith.maximumf %4, %7 : vector<6x200xf32>
    %cst_5 = arith.constant 0.000000e+00 : f32
    %9 = vector.broadcast %cst_5 : f32 to vector<6x200xf32>
    %10 = arith.maximumf %6, %9 : vector<6x200xf32>
    %c0_6 = arith.constant 0 : index
    %c0_7 = arith.constant 0 : index
    %11 = vector.load %arg5[%c0_6, %c0_7] : memref<6x200xf32, #tpu.memory_space<vmem>>, vector<6x200xf32>
    tpu.vector_store %arg5[%c0_6, %c0_7], %8 {strides = array<i32>} : memref<6x200xf32, #tpu.memory_space<vmem>>, vector<6x200xf32>,
    %c0_8 = arith.constant 0 : index
    %c0_9 = arith.constant 0 : index
    %12 = vector.load %arg6[%c0_8, %c0_9] : memref<6x200xf32, #tpu.memory_space<vmem>>, vector<6x200xf32>
    tpu.vector_store %arg6[%c0_8, %c0_9], %10 {strides = array<i32>} : memref<6x200xf32, #tpu.memory_space<vmem>>, vector<6x200xf32>,
    return
  }
  func.func @transform_0(%arg0: i32, %arg1: i32) -> (i32, i32) {
    %c0_i32 = arith.constant 0 : i32
    return %arg0, %arg1 : i32, i32
  }
  func.func @transform_1(%arg0: i32, %arg1: i32) -> (i32, i32) {
    %c0_i32 = arith.constant 0 : i32
    %c0_i32_0 = arith.constant 0 : i32
    %c0_i32_1 = arith.constant 0 : i32
    return %c0_i32, %c0_i32_0 : i32, i32
  }
  func.func @transform_2(%arg0: i32, %arg1: i32) -> (i32, i32) {
    %c0_i32 = arith.constant 0 : i32
    %c0_i32_0 = arith.constant 0 : i32
    %c0_i32_1 = arith.constant 0 : i32
    return %c0_i32, %c0_i32_0 : i32, i32
  }
  func.func @transform_3(%arg0: i32, %arg1: i32) -> (i32, i32) {
    %c0_i32 = arith.constant 0 : i32
    return %arg0, %arg1 : i32, i32
  }
  func.func @transform_4(%arg0: i32, %arg1: i32) -> (i32, i32) {
    %c0_i32 = arith.constant 0 : i32
    return %arg0, %arg1 : i32, i32
  }
}

</mosaic_0001>

<llo_original>
// kernel: _violation_pallas.1
$region0: #{_violation_pallas.1}
  #allocation0 [shape = 'u32[]', space=smem, size = 0x4, offset = 0x4, fixed_abs, tag = 'smem constant byte address 0x4 - core index']
  #allocation1 [shape = 'u32[72,128]{1,0:T(1,128)}', space=vmem, size = 0x9000, scoped, tag = 'internal scratch']
  %s0 = inlined_call_operand.hbm [shape: f32[6,200], index: 0, kind: input, shape index: {}]
  %s1 = inlined_call_operand.vmem [shape: f32[1,200], index: 1, kind: input, shape index: {}]
  %s2 = inlined_call_operand.hbm [shape: f32[1,200], index: 2, kind: input, shape index: {}]
  %s3 = inlined_call_operand.hbm [shape: f32[6,200], index: 3, kind: output, shape index: {0}]
  %s4 = inlined_call_operand.hbm [shape: f32[6,200], index: 4, kind: output, shape index: {1}]
  %5 = xla_tuple %s3, %s4
  %s6 = sld [smem:[#allocation0]]
  $region38: #{_violation_pallas.1} parent=0
    _
  %s8 = ssub.s32 1, %s6
  %s9 = scalar_select 0, %s8, %s6
  $region1: #{_violation_pallas.1} parent=0
    #allocation2 [shape = 'u8[8192]{0}', space=vmem, size = 0x2000, scoped, tag = 'input window, operand 0, single buffered']
    #allocation3 [shape = 's32[1]{0}', space=sflag, size = 0x4, scoped, tag = 'scoped memory for _violation_pallas.1']
    #allocation4 [shape = 's32[1]{0}', space=sflag, size = 0x4, scoped, tag = 'scoped memory for _violation_pallas.1']
    #allocation5 [shape = 'u8[1024]{0}', space=vmem, size = 0x400, scoped, tag = 'input window, operand 2, single buffered']
    #allocation6 [shape = 's32[1]{0}', space=sflag, size = 0x4, scoped, tag = 'scoped memory for _violation_pallas.1']
    #allocation7 [shape = 'u8[8192]{0}', space=vmem, size = 0x2000, scoped, tag = 'output window, operand 0, single buffered']
    #allocation8 [shape = 'u8[8192]{0}', space=vmem, size = 0x2000, scoped, tag = 'output window, operand 1, single buffered']
    #allocation9 [shape = 's32[1]{0}', space=sflag, size = 0x4, scoped, tag = 'scoped memory for _violation_pallas.1']
    %10 = vsyncpa [#allocation3], 0
    %11 = vsyncpa [#allocation6], 0
    %12 = vsyncpa [#allocation4], 0
    %13 = vsyncpa [#allocation9], 0
    // Predicated region
    $region2: #{_violation_pallas.1} parent=1 // pred_check
      _
    $region3: #{_violation_pallas.1} parent=1 // pred_check_branch
      %15 = sbr.rel (0) target = $region5
    $region4: #{_violation_pallas.1} parent=1 // pred_region
      %17 = vsyncadd [#allocation3], 0
      %s19 = sshll.u32 %s0, 4
      %s20 = int_to_ptr.hbm [resolvable:$true] %s19
      %s21 = sshll.u32 [#allocation2], 4
      %s22 = int_to_ptr.vmem [resolvable:$true] %s21
      %24 = dma.hbm_to_vmem [thread:$0]  %s20, 256, %s22, [#allocation3]
    $region5: #{_violation_pallas.1} parent=1 // pred_fallthru
      _
    // Predicated region
    $region6: #{_violation_pallas.1} parent=1 // pred_check
      _
    $region7: #{_violation_pallas.1} parent=1 // pred_check_branch
      %26 = sbr.rel (0) target = $region9
    $region8: #{_violation_pallas.1} parent=1 // pred_region
      _
    $region9: #{_violation_pallas.1} parent=1 // pred_fallthru
      _
    // Predicated region
    $region10: #{_violation_pallas.1} parent=1 // pred_check
      _
    $region11: #{_violation_pallas.1} parent=1 // pred_check_branch
      %28 = sbr.rel (0) target = $region13
    $region12: #{_violation_pallas.1} parent=1 // pred_region
      %30 = vsyncadd [#allocation6], 0
      %s32 = sshll.u32 %s2, 4
      %s33 = int_to_ptr.hbm [resolvable:$true] %s32
      %s34 = sshll.u32 [#allocation5], 4
      %s35 = int_to_ptr.vmem [resolvable:$true] %s34
      %37 = dma.hbm_to_vmem [thread:$0]  %s33, 32, %s35, [#allocation6]
    $region13: #{_violation_pallas.1} parent=1 // pred_fallthru
      _
    // Predicated region
    $region14: #{_violation_pallas.1} parent=1 // pred_check
      _
    $region15: #{_violation_pallas.1} parent=1 // pred_check_branch
      %39 = sbr.rel (0) target = $region17
    $region16: #{_violation_pallas.1} parent=1 // pred_region
      %41 = dma.done [#allocation3], 256
    $region17: #{_violation_pallas.1} parent=1 // pred_fallthru
      _
    // Predicated region
    $region18: #{_violation_pallas.1} parent=1 // pred_check
      _
    $region19: #{_violation_pallas.1} parent=1 // pred_check_branch
      %43 = sbr.rel (0) target = $region21
    $region20: #{_violation_pallas.1} parent=1 // pred_region
      %45 = dma.done [#allocation6], 32
    $region21: #{_violation_pallas.1} parent=1 // pred_fallthru
      _
    %v46 = vld [vmem:[%s1] sm:$0x3]
    %v47 = vld [vmem:[#allocation5] sm:$0x3]
    %v48 = vld [vmem:[#allocation2] sm:$0x3f]
    %v49 = vld [vmem:[#allocation2 + $0x8] sm:$0x3f]
    %v51 = vperm.slane %v46, 0
    %v52 = vperm.slane %v46, 1
    %v55 = vsub.f32 %v51, %v48
    %v56 = vsub.f32 %v52, %v49
    %v58 = vperm.slane %v47, 0
    %v59 = vperm.slane %v47, 1
    %v62 = vsub.f32 %v48, %v58
    %v63 = vsub.f32 %v49, %v59
    %v64 = vmax.f32 %v55, 0.0
    %v65 = vmax.f32 %v56, 0.0
    %v66 = vmax.f32 %v62, 0.0
    %v67 = vmax.f32 %v63, 0.0
    %68 = vst [vmem:[#allocation7] sm:$0x3f] %v64
    %vm69 = vcmask 586752
    %70 = vst.msk [vmem:[#allocation7 + $0x8] sm:$0x3f] %vm69, %v65
    %71 = vst [vmem:[#allocation8] sm:$0x3f] %v66
    %72 = vst.msk [vmem:[#allocation8 + $0x8] sm:$0x3f] %vm69, %v67
    // Predicated region
    $region22: #{_violation_pallas.1} parent=1 // pred_check
      _
    $region23: #{_violation_pallas.1} parent=1 // pred_check_branch
      %74 = sbr.rel (0) target = $region25
    $region24: #{_violation_pallas.1} parent=1 // pred_region
      %76 = vsyncadd [#allocation4], 0
      %s78 = sshll.u32 [#allocation7], 4
      %s79 = int_to_ptr.vmem [resolvable:$true] %s78
      %s80 = sshll.u32 %s3, 4
      %s81 = int_to_ptr.hbm [resolvable:$true] %s80
      %83 = dma.vmem_to_hbm [thread:$0]  %s79, 256, %s81, [#allocation4]
    $region25: #{_violation_pallas.1} parent=1 // pred_fallthru
      _
    // Predicated region
    $region26: #{_violation_pallas.1} parent=1 // pred_check
      _
    $region27: #{_violation_pallas.1} parent=1 // pred_check_branch
      %85 = sbr.rel (0) target = $region29
    $region28: #{_violation_pallas.1} parent=1 // pred_region
      %87 = vsyncadd [#allocation9], 0
      %s89 = sshll.u32 [#allocation8], 4
      %s90 = int_to_ptr.vmem [resolvable:$true] %s89
      %s91 = sshll.u32 %s4, 4
      %s92 = int_to_ptr.hbm [resolvable:$true] %s91
      %94 = dma.vmem_to_hbm [thread:$0]  %s90, 256, %s92, [#allocation9]
    $region29: #{_violation_pallas.1} parent=1 // pred_fallthru
      _
    // Predicated region
    $region30: #{_violation_pallas.1} parent=1 // pred_check
      _
    $region31: #{_violation_pallas.1} parent=1 // pred_check_branch
      %96 = sbr.rel (0) target = $region33
    $region32: #{_violation_pallas.1} parent=1 // pred_region
      %98 = dma.done [#allocation4], 256
    $region33: #{_violation_pallas.1} parent=1 // pred_fallthru
      _
    // Predicated region
    $region34: #{_violation_pallas.1} parent=1 // pred_check
      _
    $region35: #{_violation_pallas.1} parent=1 // pred_check_branch
      %100 = sbr.rel (0) target = $region37
    $region36: #{_violation_pallas.1} parent=1 // pred_region
      %102 = dma.done [#allocation9], 256
    $region37: #{_violation_pallas.1} parent=1 // pred_fallthru
      _
    %103 = vsyncpa [#allocation3], 1
    %104 = vsyncpa [#allocation6], 1
    %105 = vsyncpa [#allocation4], 1
    %106 = vsyncpa [#allocation9], 1

</llo_original>
